<compile_context>
chip_gen: v7x
topology: tpu7x:2x2x1
jax: 0.10.0
libtpu: 0.0.40
codegen_flags: <defaults>
</compile_context>

<pallas_src>
import functools

import jax
import jax.numpy as jnp
from jax.experimental import pallas as pl
from jax.experimental.pallas import tpu as pltpu


def _round_up(x, m):
    return ((x + m - 1) // m) * m


def _cdiv(a, b):
    return -(-a // b)


def _vmem_budget_bytes():
    """Per-generation VMEM budget (leave ~25% headroom for compiler temps)."""
    try:
        cap = int(pltpu.get_tpu_info().vmem_capacity_bytes)
    except Exception:
        cap = 64 * 1024 * 1024  # conservative: v7x per-TensorCore VMEM
    return (cap * 3) // 4


def prepare_bow_params(weight, bias, *, tk=None):
    """One-time (model-init) weight prep: pad, transpose, cast to bf16.

    weight: (L, V) f32, bias: (L,) f32  ->  dict of static kernel params.
    """
    num_labels, vocab_size = weight.shape
    l_pad = _round_up(num_labels, 128)                 # lane-dense output / MXU N
    if tk is None:
        tk = min(2048, _round_up(vocab_size, 128))     # big vocab tile (HBM-bound)
    v_pad = _round_up(vocab_size, tk)                  # zero-pad -> exact reduction
    w = jnp.pad(weight.astype(jnp.float32),
                ((0, l_pad - num_labels), (0, v_pad - vocab_size)))
    w = w.T.astype(jnp.bfloat16)                       # (V_pad, L_pad), standard KN layout
    b = jnp.pad(bias.astype(jnp.float32), (0, l_pad - num_labels)).reshape(1, l_pad)
    return {"w": w, "b": b, "num_labels": num_labels,
            "vocab_size": vocab_size, "tk": tk}


def _pick_tm(batch, max_tm=256):
    """Batch tile that minimizes padding instead of rounding up to a fixed 256."""
    n_tiles = _cdiv(batch, max_tm)
    return _round_up(_cdiv(batch, n_tiles), 8)


def bow_kernel(x_ref, w_ref, b_ref, o_ref, *, num_labels, vocab_size, tk,
               resident_w):
    """One (batch-tile, vocab-tile) grid step.

    x_ref : (tm, tk)            f32   activation tile (streams from HBM)
    w_ref : (V_pad, L_pad) or (tk, L_pad)  bf16  weights (resident vs streamed)
    b_ref : (1, L_pad)          f32   bias (lane-padded with zeros)
    o_ref : (tm, L_pad)         f32   output block; doubles as the accumulator
                                      (block index constant over k).
    """
    k = pl.program_id(1)

    @pl.when(k == 0)
    def _():
        o_ref[...] = jnp.zeros_like(o_ref)

    x = x_ref[...]
    # Mask the partial tail vocab tile (OOB block contents are undefined).
    # Static gate: no per-step cost when tk divides the vocabulary.
    if vocab_size % tk != 0:
        col = k * tk + jax.lax.broadcasted_iota(jnp.int32, x.shape, 1)
        x = jnp.where(col < vocab_size, x, 0.0)
    # bf16 MXU operands, f32 accumulation (exact for counts < 256).
    x = x.astype(jnp.bfloat16)

    if resident_w:
        start = pl.multiple_of(k * tk, tk)
        w = w_ref[pl.ds(start, tk), :]
    else:
        w = w_ref[...]

    o_ref[...] += jnp.dot(x, w, preferred_element_type=jnp.float32)

    @pl.when(k == pl.num_programs(1) - 1)
    def _():
        logits = o_ref[...] + b_ref[...]               # bias folded into epilogue
        lbl = jax.lax.broadcasted_iota(jnp.int32, logits.shape, 1)
        masked = jnp.where(lbl < num_labels, logits, -jnp.inf)
        # Numerically-stable log-softmax over the real labels only
        # (exp(-inf) = 0 drops padded label columns from the sum).
        m = jnp.max(masked, axis=-1, keepdims=True)
        shifted = masked - m
        lse = jnp.log(jnp.sum(jnp.exp(shifted), axis=-1, keepdims=True))
        o_ref[...] = shifted - lse


def bow_classifier_forward(bow_vec, params, *, force_pallas=False):
    """bow_vec: (B, V) -> (B, L) f32 log-probabilities."""
    batch, vocab_size = bow_vec.shape
    assert vocab_size == params["vocab_size"]
    num_labels, tk = params["num_labels"], params["tk"]
    w, b = params["w"], params["b"]
    v_pad, l_pad = w.shape

    # Small-problem fallback: pallas_call/DMA-pipeline setup dominates at toy
    # sizes, so plain fused XLA is faster there (same bf16-weight semantics).
    if not force_pallas and batch * vocab_size < (1 << 15):
        logits = jnp.dot(bow_vec.astype(jnp.bfloat16), w[:vocab_size, :num_labels],
                         preferred_element_type=jnp.float32) + b[0, :num_labels]
        return jax.nn.log_softmax(logits, axis=1)

    if bow_vec.dtype not in (jnp.float32, jnp.bfloat16):
        bow_vec = bow_vec.astype(jnp.float32)

    tm = _pick_tm(batch)
    num_i = _cdiv(batch, tm)
    num_k = v_pad // tk
    budget = _vmem_budget_bytes()

    # VMEM accounting (double-buffered pipeline allocations).
    w_bytes = v_pad * l_pad * 2                           # bf16 weights
    x_db = 2 * tm * tk * bow_vec.dtype.itemsize           # x tile, double-buffered
    out_db = 2 * tm * l_pad * 4                           # output block
    # Resident W only pays off when W would otherwise be re-streamed per batch
    # tile; budget 2x W since Pallas may double-buffer the (constant) block.
    resident_w = (num_i > 1) and (2 * w_bytes + x_db + out_db + (2 << 20) <= budget)

    if resident_w:
        w_spec = pl.BlockSpec((v_pad, l_pad), lambda i, k: (0, 0))   # fetched once
        need = 2 * w_bytes + x_db + out_db
    else:
        w_spec = pl.BlockSpec((tk, l_pad), lambda i, k: (k, 0))      # streamed per k
        need = 2 * tk * l_pad * 2 + x_db + out_db
    vmem_limit = min(budget, max(need + (8 << 20), 32 << 20))

    kernel = functools.partial(
        bow_kernel, num_labels=num_labels, vocab_size=vocab_size,
        tk=tk, resident_w=resident_w)

    out = pl.pallas_call(
        kernel,
        out_shape=jax.ShapeDtypeStruct((num_i * tm, l_pad), jnp.float32),
        grid_spec=pltpu.PrefetchScalarGridSpec(
            num_scalar_prefetch=0,
            grid=(num_i, num_k),
            in_specs=[
                pl.BlockSpec((tm, tk), lambda i, k: (i, k)),    # x tile (streams)
                w_spec,                                         # weights
                pl.BlockSpec((1, l_pad), lambda i, k: (0, 0)),  # bias
            ],
            out_specs=pl.BlockSpec((tm, l_pad), lambda i, k: (i, 0)),
        ),
        compiler_params=pltpu.CompilerParams(
            # Batch tiles shard across TensorCores; vocab is the reduction.
            dimension_semantics=("parallel", "arbitrary"),
            vmem_limit_bytes=int(vmem_limit),
        ),
    )(bow_vec, w, b)

    # Drop padded batch rows / padded label columns (padded cols hold -inf).
    return out[:batch, :num_labels]


if __name__ == "__main__":
    key = jax.random.PRNGKey(0)

    def make_problem(k, batch, vocab_size, num_labels):
        k_w, k_b, k_x = jax.random.split(k, 3)
        # nn.Linear default init: U(-1/sqrt(V), 1/sqrt(V)).
        bound = 1.0 / jnp.sqrt(jnp.float32(vocab_size))
        weight = jax.random.uniform(
            k_w, (num_labels, vocab_size), jnp.float32, -bound, bound)
        bias = jax.random.uniform(k_b, (num_labels,), jnp.float32, -bound, bound)
        # Synthetic bag-of-words counts (non-negative floats).
        bow_vec = jax.random.uniform(k_x, (batch, vocab_size), jnp.float32, 0.0, 3.0)
        return bow_vec, weight, bias

    def check(bow_vec, weight, bias):
        params = prepare_bow_params(weight, bias)
        out = bow_classifier_forward(bow_vec, params, force_pallas=True)
        out = jax.block_until_ready(out)
        batch, num_labels = bow_vec.shape[0], weight.shape[0]
        assert out.shape == (batch, num_labels)
        # Reference matching the kernel's bf16-operand / f32-accumulate math.
        logits_bf16 = jnp.dot(
            bow_vec.astype(jnp.bfloat16), weight.astype(jnp.bfloat16).T,
            preferred_element_type=jnp.float32) + bias
        ref_bf16 = jax.nn.log_softmax(logits_bf16, axis=1)
        # Pure-f32 PyTorch-semantics reference (looser tolerance).
        ref_f32 = jax.nn.log_softmax(bow_vec @ weight.T + bias, axis=1)
        assert jnp.allclose(out, ref_bf16, atol=2e-3, rtol=2e-3), "mismatch vs bf16 ref"
        assert jnp.allclose(out, ref_f32, atol=5e-2, rtol=5e-2), "mismatch vs f32 ref"

    k1, k2 = jax.random.split(key)
    # Small demo shape from the module spec (single tile, partial everywhere).
    check(*make_problem(k1, batch=2, vocab_size=32, num_labels=4))
    # Larger shape: multi-tile batch ("parallel" axis), multi-step vocab
    # reduction, resident-W path, tail vocab-tile masking, partial batch tile.
    check(*make_problem(k2, batch=300, vocab_size=3000, num_labels=5))

    print("KERNEL_OK")
</pallas_src>

<mosaic_0001>
module attributes {stable_mosaic.version = 11 : i64} {
  func.func @bow_kernel(%arg0: i32, %arg1: i32, %arg2: memref<8x128xf32, #tpu.memory_space<vmem>>, %arg3: memref<128x128xbf16, #tpu.memory_space<vmem>>, %arg4: memref<1x128xf32, #tpu.memory_space<vmem>>, %arg5: memref<8x128xf32, #tpu.memory_space<vmem>>) attributes {dimension_semantics = [#tpu.dimension_semantics<parallel>, #tpu.dimension_semantics<arbitrary>], iteration_bounds = array<i64: 1, 1>, scalar_prefetch = 0 : i64, scratch_operands = 0 : i64, tpu.core_type = #tpu.core_type<tc>, window_params = [{transform_indices = @transform_0, window_bounds = array<i64: 8, 128>}, {transform_indices = @transform_1, window_bounds = array<i64: 128, 128>}, {pipeline_mode = #tpu.pipeline_mode<synchronous>, transform_indices = @transform_2, window_bounds = array<i64: 1, 128>}, {transform_indices = @transform_3, window_bounds = array<i64: 8, 128>}]} {
    %c0_i32 = arith.constant 0 : i32
    %0 = arith.cmpi eq, %arg1, %c0_i32 : i32
    %1 = arith.extui %0 : i1 to i32
    %c0_i32_0 = arith.constant 0 : i32
    %2 = arith.cmpi ne, %1, %c0_i32_0 : i32
    scf.if %2 {
      %cst_11 = arith.constant 0.000000e+00 : f32
      %21 = vector.broadcast %cst_11 : f32 to vector<8x128xf32>
      %c0_12 = arith.constant 0 : index
      %c0_13 = arith.constant 0 : index
      %22 = vector.load %arg5[%c0_12, %c0_13] : memref<8x128xf32, #tpu.memory_space<vmem>>, vector<8x128xf32>
      tpu.vector_store %arg5[%c0_12, %c0_13], %21 {strides = array<i32>} : memref<8x128xf32, #tpu.memory_space<vmem>>, vector<8x128xf32>,
    } else {
    }
    %c0 = arith.constant 0 : index
    %c0_1 = arith.constant 0 : index
    %3 = vector.load %arg2[%c0, %c0_1] : memref<8x128xf32, #tpu.memory_space<vmem>>, vector<8x128xf32>
    %c128_i32 = arith.constant 128 : i32
    %4 = arith.muli %arg1, %c128_i32 : i32
    %5 = tpu.iota {dimensions = array<i32: 1>} : vector<8x128xi32>
    %6 = vector.broadcast %4 : i32 to vector<8x128xi32>
    %7 = arith.addi %6, %5 : vector<8x128xi32>
    %c32_i32 = arith.constant 32 : i32
    %8 = vector.broadcast %c32_i32 : i32 to vector<8x128xi32>
    %9 = arith.cmpi slt, %7, %8 : vector<8x128xi32>
    %cst = arith.constant 0.000000e+00 : f32
    %10 = vector.broadcast %cst : f32 to vector<8x128xf32>
    %11 = arith.select %9, %3, %10 : vector<8x128xi1>, vector<8x128xf32>
    %12 = arith.truncf %11 : vector<8x128xf32> to vector<8x128xbf16>
    %c0_2 = arith.constant 0 : index
    %c0_3 = arith.constant 0 : index
    %13 = vector.load %arg3[%c0_2, %c0_3] : memref<128x128xbf16, #tpu.memory_space<vmem>>, vector<128x128xbf16>
    %c0_4 = arith.constant 0 : index
    %c0_5 = arith.constant 0 : index
    %14 = vector.load %arg5[%c0_4, %c0_5] : memref<8x128xf32, #tpu.memory_space<vmem>>, vector<8x128xf32>
    %cst_6 = arith.constant dense<0.000000e+00> : vector<8x128xf32>
    %15 = tpu.matmul %12, %13, %cst_6 {dimension_numbers = #tpu.dot_dimension_numbers<[1], [0], [0], [1], [0, 0, 1, 1], [], []>} : vector<8x128xbf16>, vector<128x128xbf16>, vector<8x128xf32> -> vector<8x128xf32>
    %16 = arith.addf %14, %15 : vector<8x128xf32>
    %c0_7 = arith.constant 0 : index
    %c0_8 = arith.constant 0 : index
    %17 = vector.load %arg5[%c0_7, %c0_8] : memref<8x128xf32, #tpu.memory_space<vmem>>, vector<8x128xf32>
    tpu.vector_store %arg5[%c0_7, %c0_8], %16 {strides = array<i32>} : memref<8x128xf32, #tpu.memory_space<vmem>>, vector<8x128xf32>,
    %c0_i32_9 = arith.constant 0 : i32
    %18 = arith.cmpi eq, %arg1, %c0_i32_9 : i32
    %19 = arith.extui %18 : i1 to i32
    %c0_i32_10 = arith.constant 0 : i32
    %20 = arith.cmpi ne, %19, %c0_i32_10 : i32
    scf.if %20 {
      %c0_11 = arith.constant 0 : index
      %c0_12 = arith.constant 0 : index
      %21 = vector.load %arg5[%c0_11, %c0_12] : memref<8x128xf32, #tpu.memory_space<vmem>>, vector<8x128xf32>
      %c0_13 = arith.constant 0 : index
      %c0_14 = arith.constant 0 : index
      %22 = vector.load %arg4[%c0_13, %c0_14] : memref<1x128xf32, #tpu.memory_space<vmem>>, vector<1x128xf32>
      %23 = vector.broadcast %22 : vector<1x128xf32> to vector<8x128xf32>
      %24 = arith.addf %21, %23 : vector<8x128xf32>
      %25 = tpu.iota {dimensions = array<i32: 1>} : vector<8x128xi32>
      %c4_i32 = arith.constant 4 : i32
      %26 = vector.broadcast %c4_i32 : i32 to vector<8x128xi32>
      %27 = arith.cmpi slt, %25, %26 : vector<8x128xi32>
      %cst_15 = arith.constant 0xFF800000 : f32
      %28 = vector.broadcast %cst_15 : f32 to vector<8x128xf32>
      %29 = arith.select %27, %24, %28 : vector<8x128xi1>, vector<8x128xf32>
      %cst_16 = arith.constant dense<0xFF800000> : vector<8xf32>
      %30 = vector.multi_reduction <maximumf>, %29, %cst_16 [1] : vector<8x128xf32> to vector<8xf32>
      %31 = vector.shape_cast %30 : vector<8xf32> to vector<8x1xf32>
      %32 = vector.broadcast %31 : vector<8x1xf32> to vector<8x128xf32>
      %33 = arith.subf %29, %32 : vector<8x128xf32>
      %34 = math.exp %33 : vector<8x128xf32>
      %cst_17 = arith.constant dense<0.000000e+00> : vector<8xf32>
      %35 = vector.multi_reduction <add>, %34, %cst_17 [1] : vector<8x128xf32> to vector<8xf32>
      %36 = vector.shape_cast %35 : vector<8xf32> to vector<8x1xf32>
      %37 = math.log %36 : vector<8x1xf32>
      %38 = vector.broadcast %37 : vector<8x1xf32> to vector<8x128xf32>
      %39 = arith.subf %33, %38 : vector<8x128xf32>
      %c0_18 = arith.constant 0 : index
      %c0_19 = arith.constant 0 : index
      %40 = vector.load %arg5[%c0_18, %c0_19] : memref<8x128xf32, #tpu.memory_space<vmem>>, vector<8x128xf32>
      tpu.vector_store %arg5[%c0_18, %c0_19], %39 {strides = array<i32>} : memref<8x128xf32, #tpu.memory_space<vmem>>, vector<8x128xf32>,
    } else {
    }
    return
  }
  func.func @transform_0(%arg0: i32, %arg1: i32) -> (i32, i32) {
    %c0_i32 = arith.constant 0 : i32
    return %arg0, %arg1 : i32, i32
  }
  func.func @transform_1(%arg0: i32, %arg1: i32) -> (i32, i32) {
    %c0_i32 = arith.constant 0 : i32
    %c0_i32_0 = arith.constant 0 : i32
    return %arg1, %c0_i32 : i32, i32
  }
  func.func @transform_2(%arg0: i32, %arg1: i32) -> (i32, i32) {
    %c0_i32 = arith.constant 0 : i32
    %c0_i32_0 = arith.constant 0 : i32
    %c0_i32_1 = arith.constant 0 : i32
    return %c0_i32, %c0_i32_0 : i32, i32
  }
  func.func @transform_3(%arg0: i32, %arg1: i32) -> (i32, i32) {
    %c0_i32 = arith.constant 0 : i32
    %c0_i32_0 = arith.constant 0 : i32
    return %arg0, %c0_i32 : i32, i32
  }
}

</mosaic_0001>

<llo_original>
// kernel: tpu_custom_call.1
$region0: #{tpu_custom_call.1}
  #allocation0 [shape = 'u32[]', space=smem, size = 0x4, offset = 0x4, fixed_abs, tag = 'smem constant byte address 0x4 - core index']
  #allocation1 [shape = 'u32[144,128]{1,0:T(1,128)}', space=vmem, size = 0x12000, scoped, tag = 'internal scratch']
  %s0 = inlined_call_operand.hbm [shape: f32[2,32], index: 0, kind: input, shape index: {}]
  %s1 = inlined_call_operand.hbm [shape: bf16[128,128], index: 1, kind: input, shape index: {}]
  %s2 = inlined_call_operand.vmem [shape: f32[1,128], index: 2, kind: input, shape index: {}]
  %s3 = inlined_call_operand.hbm [shape: f32[8,128], index: 3, kind: output, shape index: {}]
  %s4 = sld [smem:[#allocation0]]
  $region38: #{tpu_custom_call.1} parent=0
    _
  %s6 = ssub.s32 1, %s4
  %s7 = scalar_select 0, %s6, %s4
  $region1: #{tpu_custom_call.1} parent=0
    #allocation2 [shape = 'u8[4096]{0}', space=vmem, size = 0x1000, scoped, tag = 'input window, operand 0, single buffered']
    #allocation3 [shape = 's32[1]{0}', space=sflag, size = 0x4, scoped, tag = 'scoped memory for tpu_custom_call.1']
    #allocation4 [shape = 's32[1]{0}', space=sflag, size = 0x4, scoped, tag = 'scoped memory for tpu_custom_call.1']
    #allocation5 [shape = 'u8[32768]{0}', space=vmem, size = 0x8000, scoped, tag = 'input window, operand 1, single buffered']
    #allocation6 [shape = 's32[1]{0}', space=sflag, size = 0x4, scoped, tag = 'scoped memory for tpu_custom_call.1']
    #allocation7 [shape = 'u8[4096]{0}', space=vmem, size = 0x1000, scoped, tag = 'output window, operand 0, single buffered']
    %8 = vsyncpa [#allocation3], 0
    %9 = vsyncpa [#allocation6], 0
    %10 = vsyncpa [#allocation4], 0
    // Predicated region
    $region2: #{tpu_custom_call.1} parent=1 // pred_check
      _
    $region3: #{tpu_custom_call.1} parent=1 // pred_check_branch
      %12 = sbr.rel (0) target = $region5
    $region4: #{tpu_custom_call.1} parent=1 // pred_region
      %s14 = ssub.s32 128, 32
      %15 = vsyncadd [#allocation3], %s14
      %s16 = sshll.u32 [#allocation2], 4
      %s17 = int_to_ptr.vmem [resolvable:$true] %s16
      %22 = dma.hbm_to_vmem [thread:$0]  %s0, 32, %s17, [#allocation3], 32, 32, 2
    $region5: #{tpu_custom_call.1} parent=1 // pred_fallthru
      _
    // Predicated region
    $region6: #{tpu_custom_call.1} parent=1 // pred_check
      _
    $region7: #{tpu_custom_call.1} parent=1 // pred_check_branch
      %24 = sbr.rel (0) target = $region9
    $region8: #{tpu_custom_call.1} parent=1 // pred_region
      %s26 = ssub.s32 1024, 1024
      %27 = vsyncadd [#allocation6], %s26
      %s28 = sshll.u32 [#allocation5], 4
      %s29 = int_to_ptr.vmem [resolvable:$true] %s28
      %34 = dma.hbm_to_vmem [thread:$0]  %s1, 1024, %s29, [#allocation6], 64, 64, 4
    $region9: #{tpu_custom_call.1} parent=1 // pred_fallthru
      _
    // Predicated region
    $region10: #{tpu_custom_call.1} parent=1 // pred_check
      _
    $region11: #{tpu_custom_call.1} parent=1 // pred_check_branch
      %36 = sbr.rel (0) target = $region13
    $region12: #{tpu_custom_call.1} parent=1 // pred_region
      _
    $region13: #{tpu_custom_call.1} parent=1 // pred_fallthru
      _
    // Predicated region
    $region14: #{tpu_custom_call.1} parent=1 // pred_check
      _
    $region15: #{tpu_custom_call.1} parent=1 // pred_check_branch
      %38 = sbr.rel (0) target = $region17
    $region16: #{tpu_custom_call.1} parent=1 // pred_region
      %39 = dma.done [#allocation3], 128
    $region17: #{tpu_custom_call.1} parent=1 // pred_fallthru
      _
    // Predicated region
    $region18: #{tpu_custom_call.1} parent=1 // pred_check
      _
    $region19: #{tpu_custom_call.1} parent=1 // pred_check_branch
      %41 = sbr.rel (0) target = $region21
    $region20: #{tpu_custom_call.1} parent=1 // pred_region
      %42 = dma.done [#allocation6], 1024
    $region21: #{tpu_custom_call.1} parent=1 // pred_fallthru
      _
    %p44 = scmp.eq.s32.totalorder 0, 0
    // Predicated region
    $region22: #{tpu_custom_call.1} parent=1 // pred_check
      %p45 = pneg %p44
    $region23: #{tpu_custom_call.1} parent=1 // pred_check_branch
      %47 = sbr.rel (%p45) target = $region25
    $region24: #{tpu_custom_call.1} parent=1 // pred_region
      %48 = vst [vmem:[#allocation7] sm:$0xff] 0.0
    $region25: #{tpu_custom_call.1} parent=1 // pred_fallthru
      _
    %v49 = vld [vmem:[#allocation2] sm:$0xff]
    %s50 = smul.u32 0, 128
    %v51 = vlaneseq
    %v52 = vand.u32 %v51, 127
    %v53 = vstv %s50
    %v54 = vadd.s32 %v53, %v52
    %vm55 = vcmp.lt.s32.totalorder %v54, 32
    %v56 = vsel %vm55, %v49, 0.0
    %v57 = vpack.c.bf16 %v56, %v56
    %v58 = vld [vmem:[#allocation5] sm:$0xf]
    %v59 = vld [vmem:[#allocation5 + $0x4] sm:$0xf]
    %v60 = vld [vmem:[#allocation5 + $0x8] sm:$0xf]
    %v61 = vld [vmem:[#allocation5 + $0xc] sm:$0xf]
    %v62 = vld [vmem:[#allocation5 + $0x10] sm:$0xf]
    %v63 = vld [vmem:[#allocation5 + $0x14] sm:$0xf]
    %v64 = vld [vmem:[#allocation5 + $0x18] sm:$0xf]
    %v65 = vld [vmem:[#allocation5 + $0x1c] sm:$0xf]
    %v66 = vld [vmem:[#allocation5 + $0x20] sm:$0xf]
    %v67 = vld [vmem:[#allocation5 + $0x24] sm:$0xf]
    %v68 = vld [vmem:[#allocation5 + $0x28] sm:$0xf]
    %v69 = vld [vmem:[#allocation5 + $0x2c] sm:$0xf]
    %v70 = vld [vmem:[#allocation5 + $0x30] sm:$0xf]
    %v71 = vld [vmem:[#allocation5 + $0x34] sm:$0xf]
    %v72 = vld [vmem:[#allocation5 + $0x38] sm:$0xf]
    %v73 = vld [vmem:[#allocation5 + $0x3c] sm:$0xf]
    %v74 = vld [vmem:[#allocation7] sm:$0xff]
    %v91 = vunpack.c.l.b16 %v58
    %v92 = vunpack.c.l.b16 %v59
    %v93 = vunpack.c.l.b16 %v60
    %v94 = vunpack.c.l.b16 %v61
    %v95 = vunpack.c.l.b16 %v62
    %v96 = vunpack.c.l.b16 %v63
    %v97 = vunpack.c.l.b16 %v64
    %v98 = vunpack.c.l.b16 %v65
    %v99 = vunpack.c.l.b16 %v66
    %v100 = vunpack.c.l.b16 %v67
    %v101 = vunpack.c.l.b16 %v68
    %v102 = vunpack.c.l.b16 %v69
    %v103 = vunpack.c.l.b16 %v70
    %v104 = vunpack.c.l.b16 %v71
    %v105 = vunpack.c.l.b16 %v72
    %v106 = vunpack.c.l.b16 %v73
    %v107 = vpack.c.b16 %v92, %v91
    %v108 = vpack.c.b16 %v94, %v93
    %v109 = vpack.c.b16 %v96, %v95
    %v110 = vpack.c.b16 %v98, %v97
    %v111 = vpack.c.b16 %v100, %v99
    %v112 = vpack.c.b16 %v102, %v101
    %v113 = vpack.c.b16 %v104, %v103
    %v114 = vpack.c.b16 %v106, %v105
    %123 = vmatprep.subr.bf16.mxu0 0
    %124 = vmatpush1.bf16.msra.mxu0 %v107
    %125 = vmatprep.subr.bf16.mxu0 0
    %126 = vmatpush1.bf16.msra.mxu0 %v108
    %127 = vmatprep.subr.bf16.mxu0 0
    %128 = vmatpush1.bf16.msra.mxu0 %v109
    %129 = vmatprep.subr.bf16.mxu0 0
    %130 = vmatpush1.bf16.msra.mxu0 %v110
    %131 = vmatprep.subr.bf16.mxu0 0
    %132 = vmatpush1.bf16.msra.mxu0 %v111
    %133 = vmatprep.subr.bf16.mxu0 0
    %134 = vmatpush1.bf16.msra.mxu0 %v112
    %135 = vmatprep.subr.bf16.mxu0 0
    %136 = vmatpush1.bf16.msra.mxu0 %v113
    %137 = vmatprep.subr.bf16.mxu0 0
    %138 = vmatpush1.bf16.msra.mxu0 %v114
    %139 = vmatprep.subr.bf16.mxu0 0
    %140 = vmatpush1.bf16.msra.mxu0 0
    %141 = vmatprep.subr.bf16.mxu0 0
    %142 = vmatpush1.bf16.msra.mxu0 0
    %143 = vmatprep.subr.bf16.mxu0 0
    %144 = vmatpush1.bf16.msra.mxu0 0
    %145 = vmatprep.subr.bf16.mxu0 0
    %146 = vmatpush1.bf16.msra.mxu0 0
    %147 = vmatprep.subr.bf16.mxu0 0
    %148 = vmatpush1.bf16.msra.mxu0 0
    %149 = vmatprep.subr.bf16.mxu0 0
    %150 = vmatpush1.bf16.msra.mxu0 0
    %151 = vmatprep.subr.bf16.mxu0 0
    %152 = vmatpush1.bf16.msra.mxu0 0
    %153 = vmatprep.subr.bf16.mxu0 0
    %154 = vmatpush1.bf16.msra.mxu0 0
    %155 = vmatprep.mubr.bf16.mxu0 0
    %156 = vmatmul.mubr.bf16.gmra.mrb[0].mxu0 %v57
    %v157 = vpop.f32.mrb[0].mxu0
    %v158 = vadd.f32 0.0, %v157
    %v159 = vpop.f32.mrb[0].mxu0
    %v160 = vpop.f32.mrb[0].mxu0
    %v161 = vpop.f32.mrb[0].mxu0
    %162 = vdwg.mxu0
    %v163 = vadd.f32 %v74, %v158
    %164 = vst [vmem:[#allocation7] sm:$0xff] %v163
    // Predicated region
    $region26: #{tpu_custom_call.1} parent=1 // pred_check
      %p165 = pneg %p44
    $region27: #{tpu_custom_call.1} parent=1 // pred_check_branch
      %167 = sbr.rel (%p165) target = $region29
    $region28: #{tpu_custom_call.1} parent=1 // pred_region
      %v168 = vld [vmem:[#allocation7] sm:$0xff]
      %v169 = vld [vmem:[%s2] sm:$0x1]
      %v171 = vlaneseq
      %v172 = vshrl.u32 %v171, 7
      %v173 = vsub.s32 0, %v172
      %v174 = vrot.slane %v169, %v173
      %v176 = vadd.f32 %v168, %v174
      %vm177 = vcmp.lt.s32.totalorder %v52, 4
      %v178 = vsel %vm177, %v176, -inf
      %179 = vmax.xlane.f32.xlu0 %v178
      %v180 = vpop.xlane.xlu0 %179
      %v181 = vsub.f32 %v178, %v180
      %v182 = vmul.f32 %v181, 1.442695
      %v183 = vpow.pop %v182
      %184 = vadd.xlane.f32.xlu0 %v183
      %v185 = vpop.xlane.xlu0 %184
      %v186 = vlog2.pop %v185
      %v187 = vmul.f32 %v186, 0.6931472
      %v188 = vsub.f32 %v181, %v187
      %189 = vst [vmem:[#allocation7] sm:$0xff] %v188
    $region29: #{tpu_custom_call.1} parent=1 // pred_fallthru
      _
    // Predicated region
    $region30: #{tpu_custom_call.1} parent=1 // pred_check
      _
    $region31: #{tpu_custom_call.1} parent=1 // pred_check_branch
      %191 = sbr.rel (0) target = $region33
    $region32: #{tpu_custom_call.1} parent=1 // pred_region
      %s193 = ssub.s32 128, 128
      %194 = vsyncadd [#allocation4], %s193
      %s196 = sshll.u32 [#allocation7], 4
      %s197 = int_to_ptr.vmem [resolvable:$true] %s196
      %199 = dma.vmem_to_hbm [thread:$0]  %s197, 128, %s3, [#allocation4]
    $region33: #{tpu_custom_call.1} parent=1 // pred_fallthru
      _
    // Predicated region
    $region34: #{tpu_custom_call.1} parent=1 // pred_check
      _
    $region35: #{tpu_custom_call.1} parent=1 // pred_check_branch
      %201 = sbr.rel (0) target = $region37
    $region36: #{tpu_custom_call.1} parent=1 // pred_region
      %202 = dma.done [#allocation4], 128
    $region37: #{tpu_custom_call.1} parent=1 // pred_fallthru
      _
    %203 = vsyncpa [#allocation3], 1
    %204 = vsyncpa [#allocation6], 1
    %205 = vsyncpa [#allocation4], 1

</llo_original>
